<compile_context>
chip_gen: v7x
topology: tpu7x:2x2x1
jax: 0.10.0
libtpu: 0.0.40
codegen_flags: <defaults>
</compile_context>

<pallas_src>
import functools

import jax
import jax.numpy as jnp
from jax.experimental import pallas as pl
from jax.experimental.pallas import tpu as pltpu


# ----------------------------------------------------------------------------
# Glue: dense symmetric-normalized adjacency, matching torch_geometric GCNConv
# (add_remaining_self_loops preserving existing self-loop weights, fill 1, then
#  D^-1/2 (A+I) D^-1/2, A[target, source] with flow source->target).
# ----------------------------------------------------------------------------
def gcn_norm_dense(edge_index, edge_weight, num_nodes):
    src = edge_index[0]
    dst = edge_index[1]
    if edge_weight is None:
        edge_weight = jnp.ones((edge_index.shape[1],), dtype=jnp.float32)
    edge_weight = edge_weight.astype(jnp.float32)

    is_loop = src == dst
    # Non-self-loop edges scatter-add into A[target, source].
    a = jnp.zeros((num_nodes, num_nodes), jnp.float32)
    a = a.at[dst, src].add(jnp.where(is_loop, 0.0, edge_weight))
    # add_remaining_self_loops: every node ends with exactly one self-loop whose
    # weight is the existing self-loop weight if present, else the fill value 1.
    loop_w = jnp.ones((num_nodes,), jnp.float32)
    loop_w = loop_w.at[jnp.where(is_loop, src, num_nodes)].set(
        jnp.where(is_loop, edge_weight, 1.0), mode="drop")
    a = a + jnp.diag(loop_w)

    deg = jnp.sum(a, axis=1)
    dinv = jnp.where(deg > 0.0, jax.lax.rsqrt(deg), 0.0)  # PyG masks inf -> 0
    return dinv[:, None] * a * dinv[None, :]


# ----------------------------------------------------------------------------
# Fused, row-tiled Pallas kernel:
#   per row tile:  3x (GCN conv1 + bias + ReLU) -> features tile
#                  2x (h @ w2_scaled)           -> z tile (views 1 and 3 only)
#                  lane-dense accumulation of combined^T += z^T @ A2^T-rowtile
# ----------------------------------------------------------------------------
def multiview_gnn_kernel(x_ref, a1_ref, a2t_ref, w1_ref, b1_ref, w2_ref,
                         b2c_ref, xmv_ref, feat_ref, xw_ref, comb_ref, *, nhid):
    H = nhid
    step = pl.program_id(0)

    @pl.when(step == 0)
    def _init():
        # conv1 linear stage for all three views in one MXU matmul; stays
        # resident in VMEM scratch for every later row tile.
        xw_ref[...] = jnp.dot(x_ref[...].astype(jnp.float32), w1_ref[...],
                              preferred_element_type=jnp.float32)
        # Combined-view accumulator starts at the softmax-folded conv2 bias
        # s0*b2_v1 + (s1+s2)*b2_v3, broadcast over all nodes.
        comb_ref[...] = jnp.zeros_like(comb_ref) + b2c_ref[...]

    feats = None
    z_tiles = []
    for v in range(3):                                    # static, unrolled
        a1_blk = a1_ref[v].astype(jnp.float32)            # (T, N) row tile
        xw_v = xw_ref[:, v * H:(v + 1) * H]               # (N, H) resident slice
        h_v = jnp.maximum(
            jnp.dot(a1_blk, xw_v, preferred_element_type=jnp.float32)
            + b1_ref[v], 0.0)                             # (T, H)
        feats = h_v if feats is None else feats + h_v
        # TODO(synk): dropout is identity at inference; training-mode dropout
        # (stateful RNG) is not implemented in-kernel.
        if v != 1:                                        # view 2's conv2 is dead
            k = 0 if v == 0 else 1
            # Attention scale already folded into w2; (T, 1) per-tile temporary.
            z_tiles.append(jnp.dot(h_v, w2_ref[k],
                                   preferred_element_type=jnp.float32))

    feat_ref[...] = feats.astype(feat_ref.dtype)

    # conv2 aggregation accumulated transposed so it is lane-dense:
    #   combined^T += z_v^T @ A2[v]^T-rowtile  (== (A2[v] @ z_v)^T).
    # z has a single column, so a VPU broadcast-multiply + sublane reduce is
    # used instead of a 1-column MXU feed; it stays hidden under the adjacency
    # DMA in the memory-bound regime.
    for k in range(2):
        a2t_blk = a2t_ref[k].astype(jnp.float32)          # (T, N)
        comb_ref[...] += jnp.sum(z_tiles[k] * a2t_blk, axis=0, keepdims=True)

    @pl.when(step == pl.num_programs(0) - 1)
    def _finalize():
        xmv_ref[...] = comb_ref[...].astype(xmv_ref.dtype)


def _pick_tile(n, max_tile=512, adj_vmem_budget=20 << 20):
    """Row-tile size: a multiple of 8 dividing n, keeping the 5 double-buffered
    (T, n) f32 adjacency blocks under ~20 MiB (fits v7x scoped VMEM too), and
    preferring >1 grid step so DMAs pipeline with compute."""
    if n % 8 != 0:
        return n                      # degenerate size: single full-array step
    best = 8
    for cand in range(8, min(n, max_tile) + 1, 8):
        if n % cand == 0 and 2 * 5 * cand * n * 4 <= adj_vmem_budget:
            best = cand
    if best == n and n > 8 and (n // 2) % 8 == 0:
        best = n // 2
    return best


def multiview_gnn_forward(x,
                          edge_index_v1, edge_index_v2, edge_index_v3,
                          edge_weight_v1, edge_weight_v2, edge_weight_v3,
                          params):
    """x: (N, num_features); edge_index_v*: (2, E) int32; edge_weight_v*: (E,)."""
    N, Fdim = x.shape
    H = params["w1_v1"].shape[0]

    eis = (edge_index_v1, edge_index_v2, edge_index_v3)
    ews = (edge_weight_v1, edge_weight_v2, edge_weight_v3)

    # Glue: dense normalized adjacencies.  conv1 uses the provided edge weights
    # for all three views; conv2 is only consumed for views 1 and 3 (view 2's
    # conv2 output is never read by the attention combine) and is called
    # WITHOUT edge weights in the torch module.  Pre-transpose the conv2
    # adjacencies so the kernel accumulates a lane-dense (1, N) row.
    a1 = jnp.stack([gcn_norm_dense(ei, ew, N)
                    for ei, ew in zip(eis, ews)])                          # (3,N,N)
    a2t = jnp.stack([gcn_norm_dense(eis[0], None, N).T,
                     gcn_norm_dense(eis[2], None, N).T])                   # (2,N,N)

    # Stack / pre-transpose conv1 weights into one lane-dense (F, 3H) slab.
    w1_all = jnp.concatenate(
        [params["w1_v1"].T, params["w1_v2"].T, params["w1_v3"].T], axis=1)  # (F,3H)
    b1_all = jnp.stack([params["b1_v1"].reshape(1, H),
                        params["b1_v2"].reshape(1, H),
                        params["b1_v3"].reshape(1, H)])                     # (3,1,H)

    # Fold the 3-way attention softmax into the conv2 weights/biases:
    #   combined = s0 * x_v1 + (s1 + s2) * x_v3    (AttentionLayer "bug" kept).
    att = params["att"].reshape(3).astype(jnp.float32)
    s = jax.nn.softmax(att)
    c0, c2 = s[0], s[1] + s[2]
    w2_all = jnp.stack([c0 * params["w2_v1"].T.astype(jnp.float32),
                        c2 * params["w2_v3"].T.astype(jnp.float32)])        # (2,H,1)
    b2c = (c0 * params["b2_v1"].reshape(()).astype(jnp.float32)
           + c2 * params["b2_v3"].reshape(()).astype(jnp.float32)
           ).reshape(1, 1)                                                  # (1,1)

    T = _pick_tile(N)
    grid = (N // T,)

    # VMEM budget estimate (double-buffered adjacency row tiles dominate).
    est_bytes = 4 * (2 * 5 * T * N            # a1 (3 views) + a2^T (2 views), dbuf
                     + 3 * T * N              # conv2-reduce internal temporaries
                     + N * Fdim + Fdim * 3 * H + N * 3 * H
                     + 2 * T * H + 2 * N + 8 * H + 64)
    vmem_limit = int(min(64 << 20, max(32 << 20, 2 * est_bytes)))

    kernel = functools.partial(multiview_gnn_kernel, nhid=H)

    x_mv, features = pl.pallas_call(
        kernel,
        out_shape=(jax.ShapeDtypeStruct((1, N), x.dtype),   # lane-dense combined
                   jax.ShapeDtypeStruct((N, H), x.dtype)),  # features sum
        grid_spec=pltpu.PrefetchScalarGridSpec(
            num_scalar_prefetch=0,
            grid=grid,
            in_specs=[
                pl.BlockSpec((N, Fdim), lambda i: (0, 0)),      # x (resident)
                pl.BlockSpec((3, T, N), lambda i: (0, i, 0)),   # a1 row tiles
                pl.BlockSpec((2, T, N), lambda i: (0, i, 0)),   # a2^T row tiles
                pl.BlockSpec((Fdim, 3 * H), lambda i: (0, 0)),  # w1 (resident)
                pl.BlockSpec((3, 1, H), lambda i: (0, 0, 0)),   # b1
                pl.BlockSpec((2, H, 1), lambda i: (0, 0, 0)),   # scaled w2
                pl.BlockSpec((1, 1), lambda i: (0, 0)),         # folded b2 scalar
            ],
            out_specs=[
                pl.BlockSpec((1, N), lambda i: (0, 0)),         # combined row
                pl.BlockSpec((T, H), lambda i: (i, 0)),         # features tiles
            ],
            scratch_shapes=[
                pltpu.VMEM((N, 3 * H), jnp.float32),            # resident xw
                pltpu.VMEM((1, N), jnp.float32),                # combined acc
            ]),
        compiler_params=pltpu.CompilerParams(
            # Single axis carries the conv2 reduction + step-0 xw init, so it
            # must stay "arbitrary".  (A megacore-parallel split would separate
            # the conv1/feats/z stage into its own fully-parallel pallas_call.)
            dimension_semantics=("arbitrary",),
            vmem_limit_bytes=vmem_limit),
    )(x, a1, a2t, w1_all, b1_all, w2_all, b2c)

    # torch.flatten(x_multiview) on an (N, 1) tensor -> (N,)
    return x_mv.reshape(-1), features


# ----------------------------------------------------------------------------
# Pure-JAX reference mirroring the PyTorch forward (inference mode).
# ----------------------------------------------------------------------------
def multiview_gnn_ref(x, edge_indices, edge_weights, params):
    N = x.shape[0]

    def gcn(xin, ei, ew, w, b):
        a = gcn_norm_dense(ei, ew, N)
        return a @ (xin @ w.T) + b

    att_scores = jax.nn.softmax(params["att"], axis=0)       # (3, 1)
    feats, xs = [], []
    for v in range(3):
        ei, ew = edge_indices[v], edge_weights[v]
        w1, b1 = params[f"w1_v{v+1}"], params[f"b1_v{v+1}"]
        w2, b2 = params[f"w2_v{v+1}"], params[f"b2_v{v+1}"]
        h = jax.nn.relu(gcn(x, ei, ew, w1, b1))
        feats.append(h)
        xs.append(gcn(h, ei, None, w2, b2))                  # conv2: no edge weights
    combined = (att_scores[0] * xs[0] + att_scores[1] * xs[2]
                + att_scores[2] * xs[2])
    return combined.reshape(-1), feats[0] + feats[1] + feats[2]


if __name__ == "__main__":
    N_NODES, NUM_FEATURES, NHID, N_EDGES = 16, 16, 32, 48

    key = jax.random.PRNGKey(0)
    keys = jax.random.split(key, 17)

    x = jax.random.normal(keys[0], (N_NODES, NUM_FEATURES), dtype=jnp.float32)

    def mk_edges(k):
        ka, kb, kw = jax.random.split(k, 3)
        src = jax.random.randint(ka, (N_EDGES,), 0, N_NODES)
        dst = jax.random.randint(kb, (N_EDGES,), 0, N_NODES)
        ei = jnp.stack([src, dst]).astype(jnp.int32)
        ew = jax.random.uniform(kw, (N_EDGES,), minval=0.1, maxval=1.0,
                                dtype=jnp.float32)
        return ei, ew

    ei1, ew1 = mk_edges(keys[1])
    ei2, ew2 = mk_edges(keys[2])
    ei3, ew3 = mk_edges(keys[3])

    def mk_linear(kw, kb, out_dim, in_dim, scale=0.1):
        w = jax.random.normal(kw, (out_dim, in_dim), dtype=jnp.float32) * scale
        b = jax.random.normal(kb, (out_dim,), dtype=jnp.float32) * scale
        return w, b

    params = {}
    params["w1_v1"], params["b1_v1"] = mk_linear(keys[4], keys[5], NHID, NUM_FEATURES)
    params["w2_v1"], params["b2_v1"] = mk_linear(keys[6], keys[7], 1, NHID)
    params["w1_v2"], params["b1_v2"] = mk_linear(keys[8], keys[9], NHID, NUM_FEATURES)
    params["w2_v2"], params["b2_v2"] = mk_linear(keys[10], keys[11], 1, NHID)
    params["w1_v3"], params["b1_v3"] = mk_linear(keys[12], keys[13], NHID, NUM_FEATURES)
    params["w2_v3"], params["b2_v3"] = mk_linear(keys[14], keys[15], 1, NHID)
    params["att"] = jax.random.normal(keys[16], (3, 1), dtype=jnp.float32)

    x_flat, features = multiview_gnn_forward(
        x, ei1, ei2, ei3, ew1, ew2, ew3, params)
    x_flat = jax.block_until_ready(x_flat)
    features = jax.block_until_ready(features)

    x_ref, feat_ref = multiview_gnn_ref(
        x, (ei1, ei2, ei3), (ew1, ew2, ew3), params)

    assert x_flat.shape == (N_NODES,)
    assert features.shape == (N_NODES, NHID)
    assert jnp.allclose(x_flat, x_ref, atol=1e-4, rtol=1e-4), \
        "x mismatch vs reference"
    assert jnp.allclose(features, feat_ref, atol=1e-4, rtol=1e-4), \
        "features mismatch vs reference"

    print("KERNEL_OK")
</pallas_src>

<mosaic_0001>
module attributes {stable_mosaic.version = 11 : i64} {
  func.func @multiview_gnn_kernel(%arg0: i32, %arg1: memref<16x16xf32, #tpu.memory_space<vmem>>, %arg2: memref<3x8x16xf32, #tpu.memory_space<vmem>>, %arg3: memref<2x8x16xf32, #tpu.memory_space<vmem>>, %arg4: memref<16x96xf32, #tpu.memory_space<vmem>>, %arg5: memref<3x1x32xf32, #tpu.memory_space<vmem>>, %arg6: memref<2x32x1xf32, #tpu.memory_space<vmem>>, %arg7: memref<1x1xf32, #tpu.memory_space<vmem>>, %arg8: memref<1x16xf32, #tpu.memory_space<vmem>>, %arg9: memref<8x32xf32, #tpu.memory_space<vmem>>, %arg10: memref<16x96xf32, #tpu.memory_space<vmem>>, %arg11: memref<1x16xf32, #tpu.memory_space<vmem>>) attributes {dimension_semantics = [#tpu.dimension_semantics<arbitrary>], iteration_bounds = array<i64: 2>, scalar_prefetch = 0 : i64, scratch_operands = 2 : i64, tpu.core_type = #tpu.core_type<tc>, window_params = [{pipeline_mode = #tpu.pipeline_mode<synchronous>, transform_indices = @transform_0, window_bounds = array<i64: 16, 16>}, {transform_indices = @transform_1, window_bounds = array<i64: 3, 8, 16>}, {transform_indices = @transform_2, window_bounds = array<i64: 2, 8, 16>}, {pipeline_mode = #tpu.pipeline_mode<synchronous>, transform_indices = @transform_3, window_bounds = array<i64: 16, 96>}, {pipeline_mode = #tpu.pipeline_mode<synchronous>, transform_indices = @transform_4, window_bounds = array<i64: 3, 1, 32>}, {pipeline_mode = #tpu.pipeline_mode<synchronous>, transform_indices = @transform_5, window_bounds = array<i64: 2, 32, 1>}, {pipeline_mode = #tpu.pipeline_mode<synchronous>, transform_indices = @transform_6, window_bounds = array<i64: 1, 1>}, {pipeline_mode = #tpu.pipeline_mode<synchronous>, transform_indices = @transform_7, window_bounds = array<i64: 1, 16>}, {transform_indices = @transform_8, window_bounds = array<i64: 8, 32>}]} {
    %c0_i32 = arith.constant 0 : i32
    %0 = arith.cmpi eq, %arg0, %c0_i32 : i32
    %1 = arith.extui %0 : i1 to i32
    %c0_i32_0 = arith.constant 0 : i32
    %2 = arith.cmpi ne, %1, %c0_i32_0 : i32
    scf.if %2 {
      %c0_52 = arith.constant 0 : index
      %c0_53 = arith.constant 0 : index
      %63 = vector.load %arg1[%c0_52, %c0_53] : memref<16x16xf32, #tpu.memory_space<vmem>>, vector<16x16xf32>
      %c0_54 = arith.constant 0 : index
      %c0_55 = arith.constant 0 : index
      %64 = vector.load %arg4[%c0_54, %c0_55] : memref<16x96xf32, #tpu.memory_space<vmem>>, vector<16x96xf32>
      %cst_56 = arith.constant dense<0.000000e+00> : vector<16x96xf32>
      %65 = tpu.matmul %63, %64, %cst_56 {dimension_numbers = #tpu.dot_dimension_numbers<[1], [0], [0], [1], [0, 0, 1, 1], [], []>} : vector<16x16xf32>, vector<16x96xf32>, vector<16x96xf32> -> vector<16x96xf32>
      %c0_57 = arith.constant 0 : index
      %c0_58 = arith.constant 0 : index
      %66 = vector.load %arg10[%c0_57, %c0_58] : memref<16x96xf32, #tpu.memory_space<vmem>>, vector<16x96xf32>
      tpu.vector_store %arg10[%c0_57, %c0_58], %65 {strides = array<i32>} : memref<16x96xf32, #tpu.memory_space<vmem>>, vector<16x96xf32>,
      %cst_59 = arith.constant 0.000000e+00 : f32
      %67 = vector.broadcast %cst_59 : f32 to vector<1x16xf32>
      %c0_60 = arith.constant 0 : index
      %c0_61 = arith.constant 0 : index
      %68 = vector.load %arg7[%c0_60, %c0_61] : memref<1x1xf32, #tpu.memory_space<vmem>>, vector<1x1xf32>
      %69 = vector.broadcast %68 : vector<1x1xf32> to vector<1x16xf32>
      %70 = arith.addf %67, %69 : vector<1x16xf32>
      %c0_62 = arith.constant 0 : index
      %c0_63 = arith.constant 0 : index
      %71 = vector.load %arg11[%c0_62, %c0_63] : memref<1x16xf32, #tpu.memory_space<vmem>>, vector<1x16xf32>
      tpu.vector_store %arg11[%c0_62, %c0_63], %70 {strides = array<i32>} : memref<1x16xf32, #tpu.memory_space<vmem>>, vector<1x16xf32>,
    } else {
    }
    %c0 = arith.constant 0 : index
    %c0_1 = arith.constant 0 : index
    %c0_2 = arith.constant 0 : index
    %3 = vector.load %arg2[%c0, %c0_1, %c0_2] : memref<3x8x16xf32, #tpu.memory_space<vmem>>, vector<1x8x16xf32>
    %4 = vector.shape_cast %3 : vector<1x8x16xf32> to vector<8x16xf32>
    %c0_3 = arith.constant 0 : index
    %c0_4 = arith.constant 0 : index
    %5 = vector.load %arg10[%c0_3, %c0_4] : memref<16x96xf32, #tpu.memory_space<vmem>>, vector<16x32xf32>
    %cst = arith.constant dense<0.000000e+00> : vector<8x32xf32>
    %6 = tpu.matmul %4, %5, %cst {dimension_numbers = #tpu.dot_dimension_numbers<[1], [0], [0], [1], [0, 0, 1, 1], [], []>} : vector<8x16xf32>, vector<16x32xf32>, vector<8x32xf32> -> vector<8x32xf32>
    %c0_5 = arith.constant 0 : index
    %c0_6 = arith.constant 0 : index
    %c0_7 = arith.constant 0 : index
    %7 = vector.load %arg5[%c0_5, %c0_6, %c0_7] : memref<3x1x32xf32, #tpu.memory_space<vmem>>, vector<1x1x32xf32>
    %8 = vector.shape_cast %7 : vector<1x1x32xf32> to vector<1x32xf32>
    %9 = vector.broadcast %8 : vector<1x32xf32> to vector<8x32xf32>
    %10 = arith.addf %6, %9 : vector<8x32xf32>
    %cst_8 = arith.constant 0.000000e+00 : f32
    %11 = vector.broadcast %cst_8 : f32 to vector<8x32xf32>
    %12 = arith.maximumf %10, %11 : vector<8x32xf32>
    %c0_9 = arith.constant 0 : index
    %c0_10 = arith.constant 0 : index
    %c0_11 = arith.constant 0 : index
    %13 = vector.load %arg6[%c0_9, %c0_10, %c0_11] : memref<2x32x1xf32, #tpu.memory_space<vmem>>, vector<1x32x1xf32>
    %14 = vector.shape_cast %13 : vector<1x32x1xf32> to vector<32x1xf32>
    %cst_12 = arith.constant dense<0.000000e+00> : vector<8x1xf32>
    %15 = tpu.matmul %12, %14, %cst_12 {dimension_numbers = #tpu.dot_dimension_numbers<[1], [0], [0], [1], [0, 0, 1, 1], [], []>} : vector<8x32xf32>, vector<32x1xf32>, vector<8x1xf32> -> vector<8x1xf32>
    %c1 = arith.constant 1 : index
    %c0_13 = arith.constant 0 : index
    %c0_14 = arith.constant 0 : index
    %16 = vector.load %arg2[%c1, %c0_13, %c0_14] : memref<3x8x16xf32, #tpu.memory_space<vmem>>, vector<1x8x16xf32>
    %17 = vector.shape_cast %16 : vector<1x8x16xf32> to vector<8x16xf32>
    %c0_15 = arith.constant 0 : index
    %c32 = arith.constant 32 : index
    %18 = vector.load %arg10[%c0_15, %c32] : memref<16x96xf32, #tpu.memory_space<vmem>>, vector<16x32xf32>
    %cst_16 = arith.constant dense<0.000000e+00> : vector<8x32xf32>
    %19 = tpu.matmul %17, %18, %cst_16 {dimension_numbers = #tpu.dot_dimension_numbers<[1], [0], [0], [1], [0, 0, 1, 1], [], []>} : vector<8x16xf32>, vector<16x32xf32>, vector<8x32xf32> -> vector<8x32xf32>
    %c1_17 = arith.constant 1 : index
    %c0_18 = arith.constant 0 : index
    %c0_19 = arith.constant 0 : index
    %20 = vector.load %arg5[%c1_17, %c0_18, %c0_19] : memref<3x1x32xf32, #tpu.memory_space<vmem>>, vector<1x1x32xf32>
    %21 = vector.shape_cast %20 : vector<1x1x32xf32> to vector<1x32xf32>
    %22 = vector.broadcast %21 : vector<1x32xf32> to vector<8x32xf32>
    %23 = arith.addf %19, %22 : vector<8x32xf32>
    %cst_20 = arith.constant 0.000000e+00 : f32
    %24 = vector.broadcast %cst_20 : f32 to vector<8x32xf32>
    %25 = arith.maximumf %23, %24 : vector<8x32xf32>
    %26 = arith.addf %12, %25 : vector<8x32xf32>
    %c2 = arith.constant 2 : index
    %c0_21 = arith.constant 0 : index
    %c0_22 = arith.constant 0 : index
    %27 = vector.load %arg2[%c2, %c0_21, %c0_22] : memref<3x8x16xf32, #tpu.memory_space<vmem>>, vector<1x8x16xf32>
    %28 = vector.shape_cast %27 : vector<1x8x16xf32> to vector<8x16xf32>
    %c0_23 = arith.constant 0 : index
    %c64 = arith.constant 64 : index
    %29 = vector.load %arg10[%c0_23, %c64] : memref<16x96xf32, #tpu.memory_space<vmem>>, vector<16x32xf32>
    %cst_24 = arith.constant dense<0.000000e+00> : vector<8x32xf32>
    %30 = tpu.matmul %28, %29, %cst_24 {dimension_numbers = #tpu.dot_dimension_numbers<[1], [0], [0], [1], [0, 0, 1, 1], [], []>} : vector<8x16xf32>, vector<16x32xf32>, vector<8x32xf32> -> vector<8x32xf32>
    %c2_25 = arith.constant 2 : index
    %c0_26 = arith.constant 0 : index
    %c0_27 = arith.constant 0 : index
    %31 = vector.load %arg5[%c2_25, %c0_26, %c0_27] : memref<3x1x32xf32, #tpu.memory_space<vmem>>, vector<1x1x32xf32>
    %32 = vector.shape_cast %31 : vector<1x1x32xf32> to vector<1x32xf32>
    %33 = vector.broadcast %32 : vector<1x32xf32> to vector<8x32xf32>
    %34 = arith.addf %30, %33 : vector<8x32xf32>
    %cst_28 = arith.constant 0.000000e+00 : f32
    %35 = vector.broadcast %cst_28 : f32 to vector<8x32xf32>
    %36 = arith.maximumf %34, %35 : vector<8x32xf32>
    %37 = arith.addf %26, %36 : vector<8x32xf32>
    %c1_29 = arith.constant 1 : index
    %c0_30 = arith.constant 0 : index
    %c0_31 = arith.constant 0 : index
    %38 = vector.load %arg6[%c1_29, %c0_30, %c0_31] : memref<2x32x1xf32, #tpu.memory_space<vmem>>, vector<1x32x1xf32>
    %39 = vector.shape_cast %38 : vector<1x32x1xf32> to vector<32x1xf32>
    %cst_32 = arith.constant dense<0.000000e+00> : vector<8x1xf32>
    %40 = tpu.matmul %36, %39, %cst_32 {dimension_numbers = #tpu.dot_dimension_numbers<[1], [0], [0], [1], [0, 0, 1, 1], [], []>} : vector<8x32xf32>, vector<32x1xf32>, vector<8x1xf32> -> vector<8x1xf32>
    %c0_33 = arith.constant 0 : index
    %c0_34 = arith.constant 0 : index
    %41 = vector.load %arg9[%c0_33, %c0_34] : memref<8x32xf32, #tpu.memory_space<vmem>>, vector<8x32xf32>
    tpu.vector_store %arg9[%c0_33, %c0_34], %37 {strides = array<i32>} : memref<8x32xf32, #tpu.memory_space<vmem>>, vector<8x32xf32>,
    %c0_35 = arith.constant 0 : index
    %c0_36 = arith.constant 0 : index
    %c0_37 = arith.constant 0 : index
    %42 = vector.load %arg3[%c0_35, %c0_36, %c0_37] : memref<2x8x16xf32, #tpu.memory_space<vmem>>, vector<1x8x16xf32>
    %43 = vector.shape_cast %42 : vector<1x8x16xf32> to vector<8x16xf32>
    %c0_38 = arith.constant 0 : index
    %c0_39 = arith.constant 0 : index
    %44 = vector.load %arg11[%c0_38, %c0_39] : memref<1x16xf32, #tpu.memory_space<vmem>>, vector<1x16xf32>
    %45 = vector.broadcast %15 : vector<8x1xf32> to vector<8x16xf32>
    %46 = arith.mulf %45, %43 : vector<8x16xf32>
    %cst_40 = arith.constant dense<0.000000e+00> : vector<16xf32>
    %47 = vector.multi_reduction <add>, %46, %cst_40 [0] : vector<8x16xf32> to vector<16xf32>
    %48 = vector.shape_cast %47 : vector<16xf32> to vector<1x16xf32>
    %49 = arith.addf %44, %48 : vector<1x16xf32>
    %c0_41 = arith.constant 0 : index
    %c0_42 = arith.constant 0 : index
    %50 = vector.load %arg11[%c0_41, %c0_42] : memref<1x16xf32, #tpu.memory_space<vmem>>, vector<1x16xf32>
    tpu.vector_store %arg11[%c0_41, %c0_42], %49 {strides = array<i32>} : memref<1x16xf32, #tpu.memory_space<vmem>>, vector<1x16xf32>,
    %c1_43 = arith.constant 1 : index
    %c0_44 = arith.constant 0 : index
    %c0_45 = arith.constant 0 : index
    %51 = vector.load %arg3[%c1_43, %c0_44, %c0_45] : memref<2x8x16xf32, #tpu.memory_space<vmem>>, vector<1x8x16xf32>
    %52 = vector.shape_cast %51 : vector<1x8x16xf32> to vector<8x16xf32>
    %c0_46 = arith.constant 0 : index
    %c0_47 = arith.constant 0 : index
    %53 = vector.load %arg11[%c0_46, %c0_47] : memref<1x16xf32, #tpu.memory_space<vmem>>, vector<1x16xf32>
    %54 = vector.broadcast %40 : vector<8x1xf32> to vector<8x16xf32>
    %55 = arith.mulf %54, %52 : vector<8x16xf32>
    %cst_48 = arith.constant dense<0.000000e+00> : vector<16xf32>
    %56 = vector.multi_reduction <add>, %55, %cst_48 [0] : vector<8x16xf32> to vector<16xf32>
    %57 = vector.shape_cast %56 : vector<16xf32> to vector<1x16xf32>
    %58 = arith.addf %53, %57 : vector<1x16xf32>
    %c0_49 = arith.constant 0 : index
    %c0_50 = arith.constant 0 : index
    %59 = vector.load %arg11[%c0_49, %c0_50] : memref<1x16xf32, #tpu.memory_space<vmem>>, vector<1x16xf32>
    tpu.vector_store %arg11[%c0_49, %c0_50], %58 {strides = array<i32>} : memref<1x16xf32, #tpu.memory_space<vmem>>, vector<1x16xf32>,
    %c1_i32 = arith.constant 1 : i32
    %60 = arith.cmpi eq, %arg0, %c1_i32 : i32
    %61 = arith.extui %60 : i1 to i32
    %c0_i32_51 = arith.constant 0 : i32
    %62 = arith.cmpi ne, %61, %c0_i32_51 : i32
    scf.if %62 {
      %c0_52 = arith.constant 0 : index
      %c0_53 = arith.constant 0 : index
      %63 = vector.load %arg11[%c0_52, %c0_53] : memref<1x16xf32, #tpu.memory_space<vmem>>, vector<1x16xf32>
      %c0_54 = arith.constant 0 : index
      %c0_55 = arith.constant 0 : index
      %64 = vector.load %arg8[%c0_54, %c0_55] : memref<1x16xf32, #tpu.memory_space<vmem>>, vector<1x16xf32>
      tpu.vector_store %arg8[%c0_54, %c0_55], %63 {strides = array<i32>} : memref<1x16xf32, #tpu.memory_space<vmem>>, vector<1x16xf32>,
    } else {
    }
    return
  }
  func.func @transform_0(%arg0: i32) -> (i32, i32) {
    %c0_i32 = arith.constant 0 : i32
    %c0_i32_0 = arith.constant 0 : i32
    %c0_i32_1 = arith.constant 0 : i32
    return %c0_i32, %c0_i32_0 : i32, i32
  }
  func.func @transform_1(%arg0: i32) -> (i32, i32, i32) {
    %c0_i32 = arith.constant 0 : i32
    %c0_i32_0 = arith.constant 0 : i32
    %c0_i32_1 = arith.constant 0 : i32
    return %c0_i32, %arg0, %c0_i32_0 : i32, i32, i32
  }
  func.func @transform_2(%arg0: i32) -> (i32, i32, i32) {
    %c0_i32 = arith.constant 0 : i32
    %c0_i32_0 = arith.constant 0 : i32
    %c0_i32_1 = arith.constant 0 : i32
    return %c0_i32, %arg0, %c0_i32_0 : i32, i32, i32
  }
  func.func @transform_3(%arg0: i32) -> (i32, i32) {
    %c0_i32 = arith.constant 0 : i32
    %c0_i32_0 = arith.constant 0 : i32
    %c0_i32_1 = arith.constant 0 : i32
    return %c0_i32, %c0_i32_0 : i32, i32
  }
  func.func @transform_4(%arg0: i32) -> (i32, i32, i32) {
    %c0_i32 = arith.constant 0 : i32
    %c0_i32_0 = arith.constant 0 : i32
    %c0_i32_1 = arith.constant 0 : i32
    %c0_i32_2 = arith.constant 0 : i32
    return %c0_i32, %c0_i32_0, %c0_i32_1 : i32, i32, i32
  }
  func.func @transform_5(%arg0: i32) -> (i32, i32, i32) {
    %c0_i32 = arith.constant 0 : i32
    %c0_i32_0 = arith.constant 0 : i32
    %c0_i32_1 = arith.constant 0 : i32
    %c0_i32_2 = arith.constant 0 : i32
    return %c0_i32, %c0_i32_0, %c0_i32_1 : i32, i32, i32
  }
  func.func @transform_6(%arg0: i32) -> (i32, i32) {
    %c0_i32 = arith.constant 0 : i32
    %c0_i32_0 = arith.constant 0 : i32
    %c0_i32_1 = arith.constant 0 : i32
    return %c0_i32, %c0_i32_0 : i32, i32
  }
  func.func @transform_7(%arg0: i32) -> (i32, i32) {
    %c0_i32 = arith.constant 0 : i32
    %c0_i32_0 = arith.constant 0 : i32
    %c0_i32_1 = arith.constant 0 : i32
    return %c0_i32, %c0_i32_0 : i32, i32
  }
  func.func @transform_8(%arg0: i32) -> (i32, i32) {
    %c0_i32 = arith.constant 0 : i32
    %c0_i32_0 = arith.constant 0 : i32
    return %arg0, %c0_i32 : i32, i32
  }
}

</mosaic_0001>

<llo_original>
// kernel: tpu_custom_call.1
$region0: #{tpu_custom_call.1}
  #allocation0 [shape = 'u32[]', space=smem, size = 0x4, offset = 0x4, fixed_abs, tag = 'smem constant byte address 0x4 - core index']
  #allocation1 [shape = 'u32[144,128]{1,0:T(1,128)}', space=vmem, size = 0x12000, scoped, tag = 'internal scratch']
  #allocation2 [shape = 'f32[16,96]{1,0:T(8,128)}', space=vmem, size = 0x2000, scoped, tag = 'scratch operand']
  #allocation3 [shape = 'f32[1,16]{1,0:T(1,128)}', space=vmem, size = 0x200, scoped, tag = 'scratch operand']
  #allocation4 [shape = 'f32[1,1]{1,0:T(1,128)S(1)}', space=vmem, size = 0x200, scoped, tag = 'scoped memory for tpu_custom_call.1']
  %s0 = inlined_call_operand.vmem [shape: f32[16,16], index: 0, kind: input, shape index: {}]
  %s1 = inlined_call_operand.vmem [shape: f32[3,16,16], index: 1, kind: input, shape index: {}]
  %s2 = inlined_call_operand.hbm [shape: f32[2,16,16], index: 2, kind: input, shape index: {}]
  %s3 = inlined_call_operand.vmem [shape: f32[16,96], index: 3, kind: input, shape index: {}]
  %s4 = inlined_call_operand.vmem [shape: f32[3,1,32], index: 4, kind: input, shape index: {}]
  %s5 = inlined_call_operand.vmem [shape: f32[2,32,1], index: 5, kind: input, shape index: {}]
  %s6 = inlined_call_operand.<no memory space> [shape: f32[1,1], index: 6, kind: input, shape index: {}]
  %s7 = inlined_call_operand.hbm [shape: f32[1,16], index: 7, kind: output, shape index: {0}]
  %s8 = inlined_call_operand.hbm [shape: f32[16,32], index: 8, kind: output, shape index: {1}]
  %9 = xla_tuple %s7, %s8
  %s10 = sld [smem:[#allocation0]]
  $region119: #{tpu_custom_call.1} parent=0
    _
  %s12 = ssub.s32 1, %s10
  %s13 = scalar_select 0, %s12, %s10
  %v14 = vstv %s6
  %15 = vst [vmem:[#allocation4] sm:$0x1] %v14
  $region1: #{tpu_custom_call.1} parent=0
    #allocation5 [shape = 'u8[24576]{0}', space=vmem, size = 0x6000, scoped, tag = 'input window, operand 1']
    #allocation6 [shape = 'u8[16384]{0}', space=vmem, size = 0x4000, scoped, tag = 'input window, operand 2']
    #allocation7 [shape = 's32[2]{0}', space=sflag, size = 0x8, scoped, tag = 'scoped memory for tpu_custom_call.1']
    #allocation8 [shape = 's32[2]{0}', space=sflag, size = 0x8, scoped, tag = 'scoped memory for tpu_custom_call.1']
    #allocation9 [shape = 'u8[512]{0}', space=vmem, size = 0x400, scoped, tag = 'output window, operand 0, single buffered']
    #allocation10 [shape = 'u8[8192]{0}', space=vmem, size = 0x2000, scoped, tag = 'output window, operand 1']
    #allocation11 [shape = 's32[2]{0}', space=sflag, size = 0x8, scoped, tag = 'scoped memory for tpu_custom_call.1']
    %16 = vsyncpa [#allocation7], 0
    %s17 = scalar_lea.sflag [#allocation7], 1
    %18 = vsyncpa %s17, 0
    %19 = vsyncpa [#allocation8], 0
    %20 = vsyncpa [#allocation11], 0
    %s21 = scalar_lea.sflag [#allocation11], 1
    %22 = vsyncpa %s21, 0
    loop: start=0, step=1, limit=4
    $region2: #{tpu_custom_call.1} parent=1 // loop_pre_header
      _
    $region3: #{tpu_custom_call.1} parent=1 // loop_header
      %s24 = sphi 0, %s28
      %p25 = scmp.ge.s32.totalorder %s24, 4
      %s32 = sphi 0, %s32
      %s34 = sphi 0, %s32
      %s35 = sphi 0, %s34
      %s49 = sphi 0, %s35
      %s55 = sphi 0, %s57
      %s58 = sphi 0, %s55
      %s59 = sphi 0, %s58
      %s75 = sphi 0, %s59
      %s81 = sphi 0, %s83
      %s84 = sphi 0, %s81
      %s85 = sphi 0, %s84
      %s101 = sphi 0, %s85
      %s105 = sphi 0, %s105
      %s107 = sphi 0, %s105
      %s108 = sphi 0, %s107
      %s122 = sphi 0, %s108
      %s126 = sphi 0, %s126
      %s128 = sphi 0, %s126
      %s129 = sphi 0, %s128
      %s143 = sphi 0, %s129
      %s147 = sphi 0, %s147
      %s149 = sphi 0, %s147
      %s150 = sphi 0, %s149
      %s164 = sphi 0, %s150
      %s168 = sphi 0, %s168
      %s170 = sphi 0, %s168
      %s171 = sphi 0, %s170
      %s185 = sphi 0, %s171
      %s189 = sphi 0, %s189
      %s191 = sphi 0, %s189
      %s192 = sphi 0, %s191
      %s206 = sphi 0, %s192
      %s212 = sphi 0, %s214
      %s215 = sphi 0, %s212
      %s216 = sphi 0, %s215
      %s232 = sphi 0, %s216
    $region4: #{tpu_custom_call.1} parent=1 // loop_header_branch
      %27 = sbr.rel (%p25) target = $region8
    $region5: #{tpu_custom_call.1} parent=1 // loop_body
      %s29 = ssub.s32 %s24, 1
      %s30 = ssub.s32 %s24, 2
      %s31 = sadd.s32 %s24, 1
      %s33 = sadd.s32 %s32, 1
      %p36 = scmp.eq.s32.totalorder %s24, 1
      %p37 = scmp.ne.s32.totalorder %s32, %s34
      %p38 = scmp.eq.s32.totalorder %s24, 0
      %p39 = por %p37, %p38
      %p40 = scmp.ne.s32.totalorder %s32, %s34
      %p41 = scmp.eq.s32.totalorder %s29, 1
      %p42 = por %p40, %p41
      %p43 = scmp.ne.s32.totalorder %s34, %s35
      %p44 = scmp.eq.s32.totalorder %s29, 0
      %p45 = por %p43, %p44
      %p46 = scmp.ne.s32.totalorder %s34, %s35
      %p47 = scmp.eq.s32.totalorder %s30, 1
      %p48 = por %p46, %p47
      %p50 = scmp.ne.s32.totalorder %s35, %s49
      %p51 = scmp.eq.s32.totalorder %s30, 0
      %p52 = por %p50, %p51
      %s53 = ssub.s32 %s24, %s31
      %p54 = scmp.eq.s32.totalorder %s53, 0
      %s56 = sadd.s32 %s55, 1
      %s57 = scalar_select %p54, %s55, %s56
      %p60 = pneg %p54
      %p61 = scmp.eq.s32.totalorder %s24, 1
      %p62 = por %p60, %p61
      %p63 = scmp.ne.s32.totalorder %s55, %s58
      %p64 = scmp.eq.s32.totalorder %s24, 0
      %p65 = por %p63, %p64
      %p66 = scmp.ne.s32.totalorder %s55, %s58
      %p67 = scmp.eq.s32.totalorder %s29, 1
      %p68 = por %p66, %p67
      %p69 = scmp.ne.s32.totalorder %s58, %s59
      %p70 = scmp.eq.s32.totalorder %s29, 0
      %p71 = por %p69, %p70
      %p72 = scmp.ne.s32.totalorder %s58, %s59
      %p73 = scmp.eq.s32.totalorder %s30, 1
      %p74 = por %p72, %p73
      %p76 = scmp.ne.s32.totalorder %s59, %s75
      %p77 = scmp.eq.s32.totalorder %s30, 0
      %p78 = por %p76, %p77
      %s79 = ssub.s32 %s24, %s31
      %p80 = scmp.eq.s32.totalorder %s79, 0
      %s82 = sadd.s32 %s81, 1
      %s83 = scalar_select %p80, %s81, %s82
      %p86 = pneg %p80
      %p87 = scmp.eq.s32.totalorder %s24, 1
      %p88 = por %p86, %p87
      %p89 = scmp.ne.s32.totalorder %s81, %s84
      %p90 = scmp.eq.s32.totalorder %s24, 0
      %p91 = por %p89, %p90
      %p92 = scmp.ne.s32.totalorder %s81, %s84
      %p93 = scmp.eq.s32.totalorder %s29, 1
      %p94 = por %p92, %p93
      %p95 = scmp.ne.s32.totalorder %s84, %s85
      %p96 = scmp.eq.s32.totalorder %s29, 0
      %p97 = por %p95, %p96
      %p98 = scmp.ne.s32.totalorder %s84, %s85
      %p99 = scmp.eq.s32.totalorder %s30, 1
      %p100 = por %p98, %p99
      %p102 = scmp.ne.s32.totalorder %s85, %s101
      %p103 = scmp.eq.s32.totalorder %s30, 0
      %p104 = por %p102, %p103
      %s106 = sadd.s32 %s105, 1
      %p109 = scmp.eq.s32.totalorder %s24, 1
      %p110 = scmp.ne.s32.totalorder %s105, %s107
      %p111 = scmp.eq.s32.totalorder %s24, 0
      %p112 = por %p110, %p111
      %p113 = scmp.ne.s32.totalorder %s105, %s107
      %p114 = scmp.eq.s32.totalorder %s29, 1
      %p115 = por %p113, %p114
      %p116 = scmp.ne.s32.totalorder %s107, %s108
      %p117 = scmp.eq.s32.totalorder %s29, 0
      %p118 = por %p116, %p117
      %p119 = scmp.ne.s32.totalorder %s107, %s108
      %p120 = scmp.eq.s32.totalorder %s30, 1
      %p121 = por %p119, %p120
      %p123 = scmp.ne.s32.totalorder %s108, %s122
      %p124 = scmp.eq.s32.totalorder %s30, 0
      %p125 = por %p123, %p124
      %s127 = sadd.s32 %s126, 1
      %p130 = scmp.eq.s32.totalorder %s24, 1
      %p131 = scmp.ne.s32.totalorder %s126, %s128
      %p132 = scmp.eq.s32.totalorder %s24, 0
      %p133 = por %p131, %p132
      %p134 = scmp.ne.s32.totalorder %s126, %s128
      %p135 = scmp.eq.s32.totalorder %s29, 1
      %p136 = por %p134, %p135
      %p137 = scmp.ne.s32.totalorder %s128, %s129
      %p138 = scmp.eq.s32.totalorder %s29, 0
      %p139 = por %p137, %p138
      %p140 = scmp.ne.s32.totalorder %s128, %s129
      %p141 = scmp.eq.s32.totalorder %s30, 1
      %p142 = por %p140, %p141
      %p144 = scmp.ne.s32.totalorder %s129, %s143
      %p145 = scmp.eq.s32.totalorder %s30, 0
      %p146 = por %p144, %p145
      %s148 = sadd.s32 %s147, 1
      %p151 = scmp.eq.s32.totalorder %s24, 1
      %p152 = scmp.ne.s32.totalorder %s147, %s149
      %p153 = scmp.eq.s32.totalorder %s24, 0
      %p154 = por %p152, %p153
      %p155 = scmp.ne.s32.totalorder %s147, %s149
      %p156 = scmp.eq.s32.totalorder %s29, 1
      %p157 = por %p155, %p156
      %p158 = scmp.ne.s32.totalorder %s149, %s150
      %p159 = scmp.eq.s32.totalorder %s29, 0
      %p160 = por %p158, %p159
      %p161 = scmp.ne.s32.totalorder %s149, %s150
      %p162 = scmp.eq.s32.totalorder %s30, 1
      %p163 = por %p161, %p162
      %p165 = scmp.ne.s32.totalorder %s150, %s164
      %p166 = scmp.eq.s32.totalorder %s30, 0
      %p167 = por %p165, %p166
      %s169 = sadd.s32 %s168, 1
      %p172 = scmp.eq.s32.totalorder %s24, 1
      %p173 = scmp.ne.s32.totalorder %s168, %s170
      %p174 = scmp.eq.s32.totalorder %s24, 0
      %p175 = por %p173, %p174
      %p176 = scmp.ne.s32.totalorder %s168, %s170
      %p177 = scmp.eq.s32.totalorder %s29, 1
      %p178 = por %p176, %p177
      %p179 = scmp.ne.s32.totalorder %s170, %s171
      %p180 = scmp.eq.s32.totalorder %s29, 0
      %p181 = por %p179, %p180
      %p182 = scmp.ne.s32.totalorder %s170, %s171
      %p183 = scmp.eq.s32.totalorder %s30, 1
      %p184 = por %p182, %p183
      %p186 = scmp.ne.s32.totalorder %s171, %s185
      %p187 = scmp.eq.s32.totalorder %s30, 0
      %p188 = por %p186, %p187
      %s190 = sadd.s32 %s189, 1
      %p193 = scmp.eq.s32.totalorder %s24, 1
      %p194 = scmp.ne.s32.totalorder %s189, %s191
      %p195 = scmp.eq.s32.totalorder %s24, 0
      %p196 = por %p194, %p195
      %p197 = scmp.ne.s32.totalorder %s189, %s191
      %p198 = scmp.eq.s32.totalorder %s29, 1
      %p199 = por %p197, %p198
      %p200 = scmp.ne.s32.totalorder %s191, %s192
      %p201 = scmp.eq.s32.totalorder %s29, 0
      %p202 = por %p200, %p201
      %p203 = scmp.ne.s32.totalorder %s191, %s192
      %p204 = scmp.eq.s32.totalorder %s30, 1
      %p205 = por %p203, %p204
      %p207 = scmp.ne.s32.totalorder %s192, %s206
      %p208 = scmp.eq.s32.totalorder %s30, 0
      %p209 = por %p207, %p208
      %s210 = ssub.s32 %s24, %s31
      %p211 = scmp.eq.s32.totalorder %s210, 0
      %s213 = sadd.s32 %s212, 1
      %s214 = scalar_select %p211, %s212, %s213
      %p217 = pneg %p211
      %p218 = scmp.eq.s32.totalorder %s24, 1
      %p219 = por %p217, %p218
      %p220 = scmp.ne.s32.totalorder %s212, %s215
      %p221 = scmp.eq.s32.totalorder %s24, 0
      %p222 = por %p220, %p221
      %p223 = scmp.ne.s32.totalorder %s212, %s215
      %p224 = scmp.eq.s32.totalorder %s29, 1
      %p225 = por %p223, %p224
      %p226 = scmp.ne.s32.totalorder %s215, %s216
      %p227 = scmp.eq.s32.totalorder %s29, 0
      %p228 = por %p226, %p227
      %p229 = scmp.ne.s32.totalorder %s215, %s216
      %p230 = scmp.eq.s32.totalorder %s30, 1
      %p231 = por %p229, %p230
      %p233 = scmp.ne.s32.totalorder %s216, %s232
      %p234 = scmp.eq.s32.totalorder %s30, 0
      %p235 = por %p233, %p234
      %p236 = scmp.le.s32.totalorder 1, %s24
      %p237 = scmp.lt.s32.totalorder %s24, 3
      %p238 = pnand %p236, %p237
      %p239 = pneg %p238
      // Predicated region
      $region9: #{tpu_custom_call.1} parent=5 // pred_check
        _
      $region10: #{tpu_custom_call.1} parent=5 // pred_check_branch
        %241 = sbr.rel (%p238) target = $region12
      $region11: #{tpu_custom_call.1} parent=5 // pred_region
        %s242 = ssub.s32 %s24, 1
        // Predicated region
        $region13: #{tpu_custom_call.1} parent=11 // pred_check
          %p243 = pneg %p45
        $region14: #{tpu_custom_call.1} parent=11 // pred_check_branch
          %245 = sbr.rel (%p243) target = $region16
        $region15: #{tpu_custom_call.1} parent=11 // pred_region
          _
        $region16: #{tpu_custom_call.1} parent=11 // pred_fallthru
          _
        // Predicated region
        $region17: #{tpu_custom_call.1} parent=11 // pred_check
          %p246 = pneg %p118
        $region18: #{tpu_custom_call.1} parent=11 // pred_check_branch
          %248 = sbr.rel (%p246) target = $region20
        $region19: #{tpu_custom_call.1} parent=11 // pred_region
          _
        $region20: #{tpu_custom_call.1} parent=11 // pred_fallthru
          _
        // Predicated region
        $region21: #{tpu_custom_call.1} parent=11 // pred_check
          %p249 = pneg %p139
        $region22: #{tpu_custom_call.1} parent=11 // pred_check_branch
          %251 = sbr.rel (%p249) target = $region24
        $region23: #{tpu_custom_call.1} parent=11 // pred_region
          _
        $region24: #{tpu_custom_call.1} parent=11 // pred_fallthru
          _
        // Predicated region
        $region25: #{tpu_custom_call.1} parent=11 // pred_check
          %p252 = pneg %p160
        $region26: #{tpu_custom_call.1} parent=11 // pred_check_branch
          %254 = sbr.rel (%p252) target = $region28
        $region27: #{tpu_custom_call.1} parent=11 // pred_region
          _
        $region28: #{tpu_custom_call.1} parent=11 // pred_fallthru
          _
        // Predicated region
        $region29: #{tpu_custom_call.1} parent=11 // pred_check
          %p255 = pneg %p181
        $region30: #{tpu_custom_call.1} parent=11 // pred_check_branch
          %257 = sbr.rel (%p255) target = $region32
        $region31: #{tpu_custom_call.1} parent=11 // pred_region
          _
        $region32: #{tpu_custom_call.1} parent=11 // pred_fallthru
          _
      $region12: #{tpu_custom_call.1} parent=5 // pred_fallthru
        _
      %p258 = scmp.lt.s32.totalorder %s24, 2
      // Predicated region
      $region33: #{tpu_custom_call.1} parent=5 // pred_check
        %p259 = pneg %p258
      $region34: #{tpu_custom_call.1} parent=5 // pred_check_branch
        %261 = sbr.rel (%p259) target = $region36
      $region35: #{tpu_custom_call.1} parent=5 // pred_region
        // Predicated region
        $region37: #{tpu_custom_call.1} parent=35 // pred_check
          %p262 = pneg %p65
        $region38: #{tpu_custom_call.1} parent=35 // pred_check_branch
          %264 = sbr.rel (%p262) target = $region40
        $region39: #{tpu_custom_call.1} parent=35 // pred_region
          %s265 = sand.u32 %s55, 1
          %s266 = sand.u32 %s55, 1
          %s267 = smul.addr %s266, 24
          %s268 = scalar_lea.vmem [#allocation5], %s267
          %s269 = smul.addr %s24, 8
          %s270 = scalar_lea.vmem %s1, %s269
          // Predicated region
          $region41: #{tpu_custom_call.1} parent=39 // pred_check
            _
          $region42: #{tpu_custom_call.1} parent=39 // pred_check_branch
            %272 = sbr.rel (0) target = $region44
          $region43: #{tpu_custom_call.1} parent=39 // pred_region
            // Predicated region
            $region45: #{tpu_custom_call.1} parent=43 // pred_check
              _
            $region46: #{tpu_custom_call.1} parent=43 // pred_check_branch
              %274 = sbr.rel (0) target = $region48
            $region47: #{tpu_custom_call.1} parent=43 // pred_region
              // Predicated region
              $region60: #{tpu_custom_call.1} parent=47 // pred_check
                _
              $region61: #{tpu_custom_call.1} parent=47 // pred_check_branch
                %293 = sbr.rel (0) target = $region63
              $region62: #{tpu_custom_call.1} parent=47 // pred_region
                loop: start=0, step=1, limit=1
                $region64: #{tpu_custom_call.1} parent=62 // loop_pre_header
                  _
                $region65: #{tpu_custom_call.1} parent=62 // loop_header
                  %s295 = sphi 0, %s299
                  %p296 = scmp.ge.s32.totalorder %s295, 1
                  %s300 = sphi %s270, %s270
                  %s301 = sphi %s268, %s268
                $region66: #{tpu_custom_call.1} parent=62 // loop_header_branch
                  %298 = sbr.rel (%p296) target = $region70
                $region67: #{tpu_custom_call.1} parent=62 // loop_body
                  %v302 = vld [vmem:[%s300] sm:$0xff]
                  %303 = vst [vmem:[%s301] sm:$0xff] %v302
                  %v304 = vld [vmem:[%s300 + $0x10] sm:$0xff]
                  %305 = vst [vmem:[%s301 + $0x8] sm:$0xff] %v304
                  %v306 = vld [vmem:[%s300 + $0x20] sm:$0xff]
                  %307 = vst [vmem:[%s301 + $0x10] sm:$0xff] %v306
                $region68: #{tpu_custom_call.1} parent=62 // loop_footer
                  %s299 = sadd.s32 1, %s295
                $region69: #{tpu_custom_call.1} parent=62 // loop_footer_branch
                  %294 = sbr.rel target = $region65
                $region70: #{tpu_custom_call.1} parent=62 // loop_exit
                  _
              $region63: #{tpu_custom_call.1} parent=47 // pred_fallthru
                _
              // Predicated region
              $region71: #{tpu_custom_call.1} parent=47 // pred_check
                _
              $region72: #{tpu_custom_call.1} parent=47 // pred_check_branch
                %309 = sbr.rel target = $region74
              $region73: #{tpu_custom_call.1} parent=47 // pred_region
                _
              $region74: #{tpu_custom_call.1} parent=47 // pred_fallthru
                _
            $region48: #{tpu_custom_call.1} parent=43 // pred_fallthru
              _
            // Predicated region
            $region49: #{tpu_custom_call.1} parent=43 // pred_check
              _
            $region50: #{tpu_custom_call.1} parent=43 // pred_check_branch
              %276 = sbr.rel target = $region52
            $region51: #{tpu_custom_call.1} parent=43 // pred_region
              loop: start=0, step=1, limit=1
              $region53: #{tpu_custom_call.1} parent=51 // loop_pre_header
                _
              $region54: #{tpu_custom_call.1} parent=51 // loop_header
                %s279 = sphi 0, %s283
                %p280 = scmp.ge.s32.totalorder %s279, 1
                %s284 = sphi %s270, %s270
                %s285 = sphi %s268, %s268
              $region55: #{tpu_custom_call.1} parent=51 // loop_header_branch
                %282 = sbr.rel (%p280) target = $region59
              $region56: #{tpu_custom_call.1} parent=51 // loop_body
                %v286 = vld [vmem:[%s284] sm:$0xff]
                %287 = vst [vmem:[%s285] sm:$0xff] %v286
                %v288 = vld [vmem:[%s284 + $0x10] sm:$0xff]
                %289 = vst [vmem:[%s285 + $0x8] sm:$0xff] %v288
                %v290 = vld [vmem:[%s284 + $0x20] sm:$0xff]
                %291 = vst [vmem:[%s285 + $0x10] sm:$0xff] %v290
              $region57: #{tpu_custom_call.1} parent=51 // loop_footer
                %s283 = sadd.s32 1, %s279
              $region58: #{tpu_custom_call.1} parent=51 // loop_footer_branch
                %278 = sbr.rel target = $region54
              $region59: #{tpu_custom_call.1} parent=51 // loop_exit
                _
            $region52: #{tpu_custom_call.1} parent=43 // pred_fallthru
              _
          $region44: #{tpu_custom_call.1} parent=39 // pred_fallthru
            _
          %310 = vnop
        $region40: #{tpu_custom_call.1} parent=35 // pred_fallthru
          _
        // Predicated region
        $region75: #{tpu_custom_call.1} parent=35 // pred_check
          %p311 = pneg %p91
        $region76: #{tpu_custom_call.1} parent=35 // pred_check_branch
          %313 = sbr.rel (%p311) target = $region78
        $region77: #{tpu_custom_call.1} parent=35 // pred_region
          %s314 = sand.u32 %s81, 1
          %s315 = scalar_lea.sflag [#allocation7], %s314
          %s316 = sand.u32 %s81, 1
          %s317 = smul.addr %s316, 16
          %s318 = scalar_lea.vmem [#allocation6], %s317
          %s320 = ssub.s32 256, 256
          %321 = vsyncadd %s315, %s320
          %s322 = smul.addr %s24, 128
          %s323 = scalar_lea.hbm %s2, %s322
          %s324 = sshll.u32 %s318, 4
          %s325 = int_to_ptr.vmem [resolvable:$true] %s324
          %330 = dma.hbm_to_vmem [thread:$0]  %s323, 256, %s325, %s315, 256, 128, 8
        $region78: #{tpu_custom_call.1} parent=35 // pred_fallthru
          _
      $region36: #{tpu_custom_call.1} parent=5 // pred_fallthru
        _
      %p331 = scmp.le.s32.totalorder 1, %s24
      %p332 = scmp.lt.s32.totalorder %s24, 3
      %p333 = pnand %p331, %p332
      %p334 = pneg %p333
      // Predicated region
      $region79: #{tpu_custom_call.1} parent=5 // pred_check
        _
      $region80: #{tpu_custom_call.1} parent=5 // pred_check_branch
        %336 = sbr.rel (%p333) target = $region82
      $region81: #{tpu_custom_call.1} parent=5 // pred_region
        %s337 = ssub.s32 %s24, 1
        %s338 = sand.u32 %s58, 1
        %s339 = sand.u32 %s58, 1
        %s340 = smul.addr %s339, 24
        %s341 = scalar_lea.vmem [#allocation5], %s340
        // Predicated region
        $region83: #{tpu_custom_call.1} parent=81 // pred_check
          %p342 = pneg %p71
        $region84: #{tpu_custom_call.1} parent=81 // pred_check_branch
          %344 = sbr.rel (%p342) target = $region86
        $region85: #{tpu_custom_call.1} parent=81 // pred_region
          _
        $region86: #{tpu_custom_call.1} parent=81 // pred_fallthru
          _
        %s345 = sand.u32 %s84, 1
        %s346 = scalar_lea.sflag [#allocation7], %s345
        %s347 = sand.u32 %s84, 1
        %s348 = smul.addr %s347, 16
        %s349 = scalar_lea.vmem [#allocation6], %s348
        // Predicated region
        $region87: #{tpu_custom_call.1} parent=81 // pred_check
          %p350 = pneg %p97
        $region88: #{tpu_custom_call.1} parent=81 // pred_check_branch
          %352 = sbr.rel (%p350) target = $region90
        $region89: #{tpu_custom_call.1} parent=81 // pred_region
          %353 = dma.done %s346, 256
        $region90: #{tpu_custom_call.1} parent=81 // pred_fallthru
          _
        %p354 = pneg %p45
        %p355 = pneg %p42
        %s356 = sand.u32 %s58, 1
        %s357 = sand.u32 %s58, 1
        %s358 = smul.addr %s357, 24
        %s359 = scalar_lea.vmem [#allocation5], %s358
        %p360 = pneg %p71
        %p361 = pneg %p68
        %s362 = sand.u32 %s84, 1
        %s363 = scalar_lea.sflag [#allocation7], %s362
        %s364 = sand.u32 %s84, 1
        %s365 = smul.addr %s364, 16
        %s366 = scalar_lea.vmem [#allocation6], %s365
        %p367 = pneg %p97
        %p368 = pneg %p94
        %p369 = pneg %p118
        %p370 = pneg %p115
        %p371 = pneg %p139
        %p372 = pneg %p136
        %p373 = pneg %p160
        %p374 = pneg %p157
        %p375 = pneg %p181
        %p376 = pneg %p178
        %p377 = pneg %p202
        %p378 = pneg %p199
        %p379 = pneg %p228
        %p380 = pneg %p225
        %s381 = sand.u32 %s215, 1
        %s382 = scalar_lea.sflag [#allocation11], %s381
        %s383 = sand.u32 %s215, 1
        %s384 = smul.addr %s383, 8
        %s385 = scalar_lea.vmem [#allocation10], %s384
        %p386 = scmp.eq.s32.totalorder %s29, 0
        // Predicated region
        $region91: #{tpu_custom_call.1} parent=81 // pred_check
          %p387 = pneg %p386
        $region92: #{tpu_custom_call.1} parent=81 // pred_check_branch
          %389 = sbr.rel (%p387) target = $region94
        $region93: #{tpu_custom_call.1} parent=81 // pred_region
          %v390 = vld [vmem:[%s0] sm:$0xff]
          %v391 = vld [vmem:[%s0 + $0x8] sm:$0xff]
          %v392 = vld [vmem:[%s3] sm:$0xff]
          %v393 = vld [vmem:[%s3 + $0x8] sm:$0xff]
          %vm394 = vcmask 130048
          %v396 = vsel %vm394, %v390, 0
          %v399 = vsel %vm394, %v391, 0
          %401 = vmatprep.subr.mxu0 0.0
          %402 = vmatpush1.msra.mxu0 %v392
          %403 = vmatprep.subr.mxu0 0.0
          %404 = vmatpush1.msra.mxu0 %v393
          %405 = vmatprep.subr.mxu0 0.0
          %406 = vmatpush1.msra.mxu0 0.0
          %407 = vmatprep.subr.mxu0 0.0
          %408 = vmatpush1.msra.mxu0 0.0
          %409 = vmatprep.subr.mxu0 0.0
          %410 = vmatpush1.msra.mxu0 0.0
          %411 = vmatprep.subr.mxu0 0.0
          %412 = vmatpush1.msra.mxu0 0.0
          %413 = vmatprep.subr.mxu0 0.0
          %414 = vmatpush1.msra.mxu0 0.0
          %415 = vmatprep.subr.mxu0 0.0
          %416 = vmatpush1.msra.mxu0 0.0
          %417 = vmatprep.subr.mxu0 0.0
          %418 = vmatpush1.msra.mxu0 0.0
          %419 = vmatprep.subr.mxu0 0.0
          %420 = vmatpush1.msra.mxu0 0.0
          %421 = vmatprep.subr.mxu0 0.0
          %422 = vmatpush1.msra.mxu0 0.0
          %423 = vmatprep.subr.mxu0 0.0
          %424 = vmatpush1.msra.mxu0 0.0
          %425 = vmatprep.subr.mxu0 0.0
          %426 = vmatpush1.msra.mxu0 0.0
          %427 = vmatprep.subr.mxu0 0.0
          %428 = vmatpush1.msra.mxu0 0.0
          %429 = vmatprep.subr.mxu0 0.0
          %430 = vmatpush1.msra.mxu0 0.0
          %431 = vmatprep.subr.mxu0 0.0
          %432 = vmatpush1.msra.mxu0 0.0
          %433 = vmatprep.subr.mxu0 0.0
          %434 = vmatpush1.msra.mxu0 0.0
          %435 = vmatprep.subr.mxu0 0.0
          %436 = vmatpush1.msra.mxu0 0.0
          %437 = vmatprep.subr.mxu0 0.0
          %438 = vmatpush1.msra.mxu0 0.0
          %439 = vmatprep.subr.mxu0 0.0
          %440 = vmatpush1.msra.mxu0 0.0
          %441 = vmatprep.subr.mxu0 0.0
          %442 = vmatpush1.msra.mxu0 0.0
          %443 = vmatprep.subr.mxu0 0.0
          %444 = vmatpush1.msra.mxu0 0.0
          %445 = vmatprep.subr.mxu0 0.0
          %446 = vmatpush1.msra.mxu0 0.0
          %447 = vmatprep.subr.mxu0 0.0
          %448 = vmatpush1.msra.mxu0 0.0
          %449 = vmatprep.subr.mxu0 0.0
          %450 = vmatpush1.msra.mxu0 0.0
          %451 = vmatprep.subr.mxu0 0.0
          %452 = vmatpush1.msra.mxu0 0.0
          %453 = vmatprep.subr.mxu0 0.0
          %454 = vmatpush1.msra.mxu0 0.0
          %455 = vmatprep.subr.mxu0 0.0
          %456 = vmatpush1.msra.mxu0 0.0
          %457 = vmatprep.subr.mxu0 0.0
          %458 = vmatpush1.msra.mxu0 0.0
          %459 = vmatprep.subr.mxu0 0.0
          %460 = vmatpush1.msra.mxu0 0.0
          %461 = vmatprep.subr.mxu0 0.0
          %462 = vmatpush1.msra.mxu0 0.0
          %463 = vmatprep.subr.mxu0 0.0
          %464 = vmatpush1.msra.mxu0 0.0
          %465 = vmatprep.mubr.f32.mxu0 0.0
          %466 = vmatmul.mubr.f32.gmra.mrb[0].mxu0 %v396
          %v467 = vpop.f32.mrb[0].mxu0
          %v468 = vadd.f32 0.0, %v467
          %v469 = vpop.f32.mrb[0].mxu0
          %470 = vmatprep.mubr.f32.mxu0 0.0
          %471 = vmatmul.mubr.f32.gmra.mrb[0].mxu0 %v399
          %v472 = vpop.f32.mrb[0].mxu0
          %v473 = vadd.f32 0.0, %v472
          %v474 = vpop.f32.mrb[0].mxu0
          %475 = vdwg.mxu0
          %vm476 = vcmask 785408
          %477 = vst.msk [vmem:[#allocation2] sm:$0xff] %vm476, %v468
          %478 = vst.msk [vmem:[#allocation2 + $0x8] sm:$0xff] %vm476, %v473
          %v479 = vld [vmem:[#allocation4] sm:$0x1]
          %481 = vset.pattern.permute.xlu0 0
          %482 = vperm.xlu0 %481, %v479
          %v483 = vpop.permute.xlu0 %482
          %v485 = vlaneseq
          %v486 = vshrl.u32 %v485, 7
          %v487 = vsub.s32 0, %v486
          %v488 = vrot.slane %v483, %v487
          %v489 = vadd.f32 %v488, 0.0
          %vm490 = vcmask 122880
          %491 = vst.msk [vmem:[#allocation3] sm:$0x1] %vm490, %v489
        $region94: #{tpu_custom_call.1} parent=81 // pred_fallthru
          _
        %v492 = vld [vmem:[%s341] sm:$0xff]
        %v493 = vld [vmem:[#allocation2] sm:$0xff]
        %v494 = vld [vmem:[#allocation2 + $0x8] sm:$0xff]
        %v495 = vld [vmem:[%s4] sm:$0x1]
        %v497 = vlaneseq
        %v498 = vshrl.u32 %v497, 7
        %v499 = vsub.s32 0, %v498
        %v500 = vrot.slane %v495, %v499
        %vm502 = vcmask 130048
        %v504 = vsel %vm502, %v492, 0
        %506 = vmatprep.subr.mxu0 0.0
        %507 = vmatpush1.msra.mxu0 %v493
        %508 = vmatprep.subr.mxu0 0.0
        %509 = vmatpush1.msra.mxu0 %v494
        %510 = vmatprep.subr.mxu0 0.0
        %511 = vmatpush1.msra.mxu0 0.0
        %512 = vmatprep.subr.mxu0 0.0
        %513 = vmatpush1.msra.mxu0 0.0
        %514 = vmatprep.subr.mxu0 0.0
        %515 = vmatpush1.msra.mxu0 0.0
        %516 = vmatprep.subr.mxu0 0.0
        %517 = vmatpush1.msra.mxu0 0.0
        %518 = vmatprep.subr.mxu0 0.0
        %519 = vmatpush1.msra.mxu0 0.0
        %520 = vmatprep.subr.mxu0 0.0
        %521 = vmatpush1.msra.mxu0 0.0
        %522 = vmatprep.subr.mxu0 0.0
        %523 = vmatpush1.msra.mxu0 0.0
        %524 = vmatprep.subr.mxu0 0.0
        %525 = vmatpush1.msra.mxu0 0.0
        %526 = vmatprep.subr.mxu0 0.0
        %527 = vmatpush1.msra.mxu0 0.0
        %528 = vmatprep.subr.mxu0 0.0
        %529 = vmatpush1.msra.mxu0 0.0
        %530 = vmatprep.subr.mxu0 0.0
        %531 = vmatpush1.msra.mxu0 0.0
        %532 = vmatprep.subr.mxu0 0.0
        %533 = vmatpush1.msra.mxu0 0.0
        %534 = vmatprep.subr.mxu0 0.0
        %535 = vmatpush1.msra.mxu0 0.0
        %536 = vmatprep.subr.mxu0 0.0
        %537 = vmatpush1.msra.mxu0 0.0
        %538 = vmatprep.subr.mxu0 0.0
        %539 = vmatpush1.msra.mxu0 0.0
        %540 = vmatprep.subr.mxu0 0.0
        %541 = vmatpush1.msra.mxu0 0.0
        %542 = vmatprep.subr.mxu0 0.0
        %543 = vmatpush1.msra.mxu0 0.0
        %544 = vmatprep.subr.mxu0 0.0
        %545 = vmatpush1.msra.mxu0 0.0
        %546 = vmatprep.subr.mxu0 0.0
        %547 = vmatpush1.msra.mxu0 0.0
        %548 = vmatprep.subr.mxu0 0.0
        %549 = vmatpush1.msra.mxu0 0.0
        %550 = vmatprep.subr.mxu0 0.0
        %551 = vmatpush1.msra.mxu0 0.0
        %552 = vmatprep.subr.mxu0 0.0
        %553 = vmatpush1.msra.mxu0 0.0
        %554 = vmatprep.subr.mxu0 0.0
        %555 = vmatpush1.msra.mxu0 0.0
        %556 = vmatprep.subr.mxu0 0.0
        %557 = vmatpush1.msra.mxu0 0.0
        %558 = vmatprep.subr.mxu0 0.0
        %559 = vmatpush1.msra.mxu0 0.0
        %560 = vmatprep.subr.mxu0 0.0
        %561 = vmatpush1.msra.mxu0 0.0
        %562 = vmatprep.subr.mxu0 0.0
        %563 = vmatpush1.msra.mxu0 0.0
        %564 = vmatprep.subr.mxu0 0.0
        %565 = vmatpush1.msra.mxu0 0.0
        %566 = vmatprep.subr.mxu0 0.0
        %567 = vmatpush1.msra.mxu0 0.0
        %568 = vmatprep.subr.mxu0 0.0
        %569 = vmatpush1.msra.mxu0 0.0
        %570 = vmatprep.mubr.f32.mxu0 0.0
        %571 = vmatmul.mubr.f32.gmra.mrb[0].mxu0 %v504
        %v572 = vpop.f32.mrb[0].mxu0
        %v573 = vadd.f32 %v500, %v572
        %v574 = vpop.f32.mrb[0].mxu0
        %575 = vdwg.mxu0
        %v576 = vmax.f32 %v573, 0.0
        %v577 = vld [vmem:[%s5] sm:$0xff]
        %v578 = vld [vmem:[%s5 + $0x8] sm:$0xff]
        %v579 = vld [vmem:[%s5 + $0x10] sm:$0xff]
        %v580 = vld [vmem:[%s5 + $0x18] sm:$0xff]
        %vm581 = vcmask 261120
        %v583 = vsel %vm581, %v576, 0
        %585 = vmatprep.subr.mxu0 0.0
        %586 = vmatpush1.msra.mxu0 %v577
        %587 = vmatprep.subr.mxu0 0.0
        %588 = vmatpush1.msra.mxu0 %v578
        %589 = vmatprep.subr.mxu0 0.0
        %590 = vmatpush1.msra.mxu0 %v579
        %591 = vmatprep.subr.mxu0 0.0
        %592 = vmatpush1.msra.mxu0 %v580
        %593 = vmatprep.subr.mxu0 0.0
        %594 = vmatpush1.msra.mxu0 0.0
        %595 = vmatprep.subr.mxu0 0.0
        %596 = vmatpush1.msra.mxu0 0.0
        %597 = vmatprep.subr.mxu0 0.0
        %598 = vmatpush1.msra.mxu0 0.0
        %599 = vmatprep.subr.mxu0 0.0
        %600 = vmatpush1.msra.mxu0 0.0
        %601 = vmatprep.subr.mxu0 0.0
        %602 = vmatpush1.msra.mxu0 0.0
        %603 = vmatprep.subr.mxu0 0.0
        %604 = vmatpush1.msra.mxu0 0.0
        %605 = vmatprep.subr.mxu0 0.0
        %606 = vmatpush1.msra.mxu0 0.0
        %607 = vmatprep.subr.mxu0 0.0
        %608 = vmatpush1.msra.mxu0 0.0
        %609 = vmatprep.subr.mxu0 0.0
        %610 = vmatpush1.msra.mxu0 0.0
        %611 = vmatprep.subr.mxu0 0.0
        %612 = vmatpush1.msra.mxu0 0.0
        %613 = vmatprep.subr.mxu0 0.0
        %614 = vmatpush1.msra.mxu0 0.0
        %615 = vmatprep.subr.mxu0 0.0
        %616 = vmatpush1.msra.mxu0 0.0
        %617 = vmatprep.subr.mxu0 0.0
        %618 = vmatpush1.msra.mxu0 0.0
        %619 = vmatprep.subr.mxu0 0.0
        %620 = vmatpush1.msra.mxu0 0.0
        %621 = vmatprep.subr.mxu0 0.0
        %622 = vmatpush1.msra.mxu0 0.0
        %623 = vmatprep.subr.mxu0 0.0
        %624 = vmatpush1.msra.mxu0 0.0
        %625 = vmatprep.subr.mxu0 0.0
        %626 = vmatpush1.msra.mxu0 0.0
        %627 = vmatprep.subr.mxu0 0.0
        %628 = vmatpush1.msra.mxu0 0.0
        %629 = vmatprep.subr.mxu0 0.0
        %630 = vmatpush1.msra.mxu0 0.0
        %631 = vmatprep.subr.mxu0 0.0
        %632 = vmatpush1.msra.mxu0 0.0
        %633 = vmatprep.subr.mxu0 0.0
        %634 = vmatpush1.msra.mxu0 0.0
        %635 = vmatprep.subr.mxu0 0.0
        %636 = vmatpush1.msra.mxu0 0.0
        %637 = vmatprep.subr.mxu0 0.0
        %638 = vmatpush1.msra.mxu0 0.0
        %639 = vmatprep.subr.mxu0 0.0
        %640 = vmatpush1.msra.mxu0 0.0
        %641 = vmatprep.subr.mxu0 0.0
        %642 = vmatpush1.msra.mxu0 0.0
        %643 = vmatprep.subr.mxu0 0.0
        %644 = vmatpush1.msra.mxu0 0.0
        %645 = vmatprep.subr.mxu0 0.0
        %646 = vmatpush1.msra.mxu0 0.0
        %647 = vmatprep.subr.mxu0 0.0
        %648 = vmatpush1.msra.mxu0 0.0
        %649 = vmatprep.mubr.f32.mxu0 0.0
        %650 = vmatmul.mubr.f32.gmra.mrb[0].mxu0 %v583
        %v651 = vpop.f32.mrb[0].mxu0
        %v652 = vadd.f32 0.0, %v651
        %v653 = vpop.f32.mrb[0].mxu0
        %654 = vdwg.mxu0
        %s655 = scalar_lea.vmem %s341, 8 [#allocation5]
        %v656 = vld [vmem:[%s655] sm:$0xff]
        %s657 = scalar_lea.vmem %s4, 1
        %v658 = vld [vmem:[%s657] sm:$0x1]
        %v660 = vlaneseq
        %v661 = vshrl.u32 %v660, 7
        %v662 = vsub.s32 0, %v661
        %v663 = vrot.slane %v658, %v662
        %667 = vrot.lane.b32.xlu0 %v493, 96
        %v668 = vpop.permute.xlu0 %667
        %669 = vrot.lane.b32.xlu0 %v494, 96
        %v670 = vpop.permute.xlu0 %669
        %v674 = vsel %vm502, %v656, 0
        %676 = vmatprep.subr.mxu0 0.0
        %677 = vmatpush1.msra.mxu0 %v668
        %678 = vmatprep.subr.mxu0 0.0
        %679 = vmatpush1.msra.mxu0 %v670
        %680 = vmatprep.subr.mxu0 0.0
        %681 = vmatpush1.msra.mxu0 0.0
        %682 = vmatprep.subr.mxu0 0.0
        %683 = vmatpush1.msra.mxu0 0.0
        %684 = vmatprep.subr.mxu0 0.0
        %685 = vmatpush1.msra.mxu0 0.0
        %686 = vmatprep.subr.mxu0 0.0
        %687 = vmatpush1.msra.mxu0 0.0
        %688 = vmatprep.subr.mxu0 0.0
        %689 = vmatpush1.msra.mxu0 0.0
        %690 = vmatprep.subr.mxu0 0.0
        %691 = vmatpush1.msra.mxu0 0.0
        %692 = vmatprep.subr.mxu0 0.0
        %693 = vmatpush1.msra.mxu0 0.0
        %694 = vmatprep.subr.mxu0 0.0
        %695 = vmatpush1.msra.mxu0 0.0
        %696 = vmatprep.subr.mxu0 0.0
        %697 = vmatpush1.msra.mxu0 0.0
        %698 = vmatprep.subr.mxu0 0.0
        %699 = vmatpush1.msra.mxu0 0.0
        %700 = vmatprep.subr.mxu0 0.0
        %701 = vmatpush1.msra.mxu0 0.0
        %702 = vmatprep.subr.mxu0 0.0
        %703 = vmatpush1.msra.mxu0 0.0
        %704 = vmatprep.subr.mxu0 0.0
        %705 = vmatpush1.msra.mxu0 0.0
        %706 = vmatprep.subr.mxu0 0.0
        %707 = vmatpush1.msra.mxu0 0.0
        %708 = vmatprep.subr.mxu0 0.0
        %709 = vmatpush1.msra.mxu0 0.0
        %710 = vmatprep.subr.mxu0 0.0
        %711 = vmatpush1.msra.mxu0 0.0
        %712 = vmatprep.subr.mxu0 0.0
        %713 = vmatpush1.msra.mxu0 0.0
        %714 = vmatprep.subr.mxu0 0.0
        %715 = vmatpush1.msra.mxu0 0.0
        %716 = vmatprep.subr.mxu0 0.0
        %717 = vmatpush1.msra.mxu0 0.0
        %718 = vmatprep.subr.mxu0 0.0
        %719 = vmatpush1.msra.mxu0 0.0
        %720 = vmatprep.subr.mxu0 0.0
        %721 = vmatpush1.msra.mxu0 0.0
        %722 = vmatprep.subr.mxu0 0.0
        %723 = vmatpush1.msra.mxu0 0.0
        %724 = vmatprep.subr.mxu0 0.0
        %725 = vmatpush1.msra.mxu0 0.0
        %726 = vmatprep.subr.mxu0 0.0
        %727 = vmatpush1.msra.mxu0 0.0
        %728 = vmatprep.subr.mxu0 0.0
        %729 = vmatpush1.msra.mxu0 0.0
        %730 = vmatprep.subr.mxu0 0.0
        %731 = vmatpush1.msra.mxu0 0.0
        %732 = vmatprep.subr.mxu0 0.0
        %733 = vmatpush1.msra.mxu0 0.0
        %734 = vmatprep.subr.mxu0 0.0
        %735 = vmatpush1.msra.mxu0 0.0
        %736 = vmatprep.subr.mxu0 0.0
        %737 = vmatpush1.msra.mxu0 0.0
        %738 = vmatprep.subr.mxu0 0.0
        %739 = vmatpush1.msra.mxu0 0.0
        %740 = vmatprep.mubr.f32.mxu0 0.0
        %741 = vmatmul.mubr.f32.gmra.mrb[0].mxu0 %v674
        %v742 = vpop.f32.mrb[0].mxu0
        %v743 = vadd.f32 %v663, %v742
        %v744 = vpop.f32.mrb[0].mxu0
        %745 = vdwg.mxu0
        %v746 = vmax.f32 %v743, 0.0
        %v747 = vadd.f32 %v576, %v746
        %s748 = scalar_lea.vmem %s341, 16 [#allocation5]
        %v749 = vld [vmem:[%s748] sm:$0xff]
        %s750 = scalar_lea.vmem %s4, 2
        %v751 = vld [vmem:[%s750] sm:$0x1]
        %v753 = vlaneseq
        %v754 = vshrl.u32 %v753, 7
        %v755 = vsub.s32 0, %v754
        %v756 = vrot.slane %v751, %v755
        %758 = vrot.lane.b32.xlu0 %v493, 64
        %v759 = vpop.permute.xlu0 %758
        %760 = vrot.lane.b32.xlu0 %v494, 64
        %v761 = vpop.permute.xlu0 %760
        %v765 = vsel %vm502, %v749, 0
        %767 = vmatprep.subr.mxu0 0.0
        %768 = vmatpush1.msra.mxu0 %v759
        %769 = vmatprep.subr.mxu0 0.0
        %770 = vmatpush1.msra.mxu0 %v761
        %771 = vmatprep.subr.mxu0 0.0
        %772 = vmatpush1.msra.mxu0 0.0
        %773 = vmatprep.subr.mxu0 0.0
        %774 = vmatpush1.msra.mxu0 0.0
        %775 = vmatprep.subr.mxu0 0.0
        %776 = vmatpush1.msra.mxu0 0.0
        %777 = vmatprep.subr.mxu0 0.0
        %778 = vmatpush1.msra.mxu0 0.0
        %779 = vmatprep.subr.mxu0 0.0
        %780 = vmatpush1.msra.mxu0 0.0
        %781 = vmatprep.subr.mxu0 0.0
        %782 = vmatpush1.msra.mxu0 0.0
        %783 = vmatprep.subr.mxu0 0.0
        %784 = vmatpush1.msra.mxu0 0.0
        %785 = vmatprep.subr.mxu0 0.0
        %786 = vmatpush1.msra.mxu0 0.0
        %787 = vmatprep.subr.mxu0 0.0
        %788 = vmatpush1.msra.mxu0 0.0
        %789 = vmatprep.subr.mxu0 0.0
        %790 = vmatpush1.msra.mxu0 0.0
        %791 = vmatprep.subr.mxu0 0.0
        %792 = vmatpush1.msra.mxu0 0.0
        %793 = vmatprep.subr.mxu0 0.0
        %794 = vmatpush1.msra.mxu0 0.0
        %795 = vmatprep.subr.mxu0 0.0
        %796 = vmatpush1.msra.mxu0 0.0
        %797 = vmatprep.subr.mxu0 0.0
        %798 = vmatpush1.msra.mxu0 0.0
        %799 = vmatprep.subr.mxu0 0.0
        %800 = vmatpush1.msra.mxu0 0.0
        %801 = vmatprep.subr.mxu0 0.0
        %802 = vmatpush1.msra.mxu0 0.0
        %803 = vmatprep.subr.mxu0 0.0
        %804 = vmatpush1.msra.mxu0 0.0
        %805 = vmatprep.subr.mxu0 0.0
        %806 = vmatpush1.msra.mxu0 0.0
        %807 = vmatprep.subr.mxu0 0.0
        %808 = vmatpush1.msra.mxu0 0.0
        %809 = vmatprep.subr.mxu0 0.0
        %810 = vmatpush1.msra.mxu0 0.0
        %811 = vmatprep.subr.mxu0 0.0
        %812 = vmatpush1.msra.mxu0 0.0
        %813 = vmatprep.subr.mxu0 0.0
        %814 = vmatpush1.msra.mxu0 0.0
        %815 = vmatprep.subr.mxu0 0.0
        %816 = vmatpush1.msra.mxu0 0.0
        %817 = vmatprep.subr.mxu0 0.0
        %818 = vmatpush1.msra.mxu0 0.0
        %819 = vmatprep.subr.mxu0 0.0
        %820 = vmatpush1.msra.mxu0 0.0
        %821 = vmatprep.subr.mxu0 0.0
        %822 = vmatpush1.msra.mxu0 0.0
        %823 = vmatprep.subr.mxu0 0.0
        %824 = vmatpush1.msra.mxu0 0.0
        %825 = vmatprep.subr.mxu0 0.0
        %826 = vmatpush1.msra.mxu0 0.0
        %827 = vmatprep.subr.mxu0 0.0
        %828 = vmatpush1.msra.mxu0 0.0
        %829 = vmatprep.subr.mxu0 0.0
        %830 = vmatpush1.msra.mxu0 0.0
        %831 = vmatprep.mubr.f32.mxu0 0.0
        %832 = vmatmul.mubr.f32.gmra.mrb[0].mxu0 %v765
        %v833 = vpop.f32.mrb[0].mxu0
        %v834 = vadd.f32 %v756, %v833
        %v835 = vpop.f32.mrb[0].mxu0
        %836 = vdwg.mxu0
        %v837 = vmax.f32 %v834, 0.0
        %v838 = vadd.f32 %v747, %v837
        %s839 = scalar_lea.vmem %s5, 32
        %v840 = vld [vmem:[%s839] sm:$0xff]
        %v841 = vld [vmem:[%s839 + $0x8] sm:$0xff]
        %v842 = vld [vmem:[%s839 + $0x10] sm:$0xff]
        %v843 = vld [vmem:[%s839 + $0x18] sm:$0xff]
        %v845 = vsel %vm581, %v837, 0
        %847 = vmatprep.subr.mxu0 0.0
        %848 = vmatpush1.msra.mxu0 %v840
        %849 = vmatprep.subr.mxu0 0.0
        %850 = vmatpush1.msra.mxu0 %v841
        %851 = vmatprep.subr.mxu0 0.0
        %852 = vmatpush1.msra.mxu0 %v842
        %853 = vmatprep.subr.mxu0 0.0
        %854 = vmatpush1.msra.mxu0 %v843
        %855 = vmatprep.subr.mxu0 0.0
        %856 = vmatpush1.msra.mxu0 0.0
        %857 = vmatprep.subr.mxu0 0.0
        %858 = vmatpush1.msra.mxu0 0.0
        %859 = vmatprep.subr.mxu0 0.0
        %860 = vmatpush1.msra.mxu0 0.0
        %861 = vmatprep.subr.mxu0 0.0
        %862 = vmatpush1.msra.mxu0 0.0
        %863 = vmatprep.subr.mxu0 0.0
        %864 = vmatpush1.msra.mxu0 0.0
        %865 = vmatprep.subr.mxu0 0.0
        %866 = vmatpush1.msra.mxu0 0.0
        %867 = vmatprep.subr.mxu0 0.0
        %868 = vmatpush1.msra.mxu0 0.0
        %869 = vmatprep.subr.mxu0 0.0
        %870 = vmatpush1.msra.mxu0 0.0
        %871 = vmatprep.subr.mxu0 0.0
        %872 = vmatpush1.msra.mxu0 0.0
        %873 = vmatprep.subr.mxu0 0.0
        %874 = vmatpush1.msra.mxu0 0.0
        %875 = vmatprep.subr.mxu0 0.0
        %876 = vmatpush1.msra.mxu0 0.0
        %877 = vmatprep.subr.mxu0 0.0
        %878 = vmatpush1.msra.mxu0 0.0
        %879 = vmatprep.subr.mxu0 0.0
        %880 = vmatpush1.msra.mxu0 0.0
        %881 = vmatprep.subr.mxu0 0.0
        %882 = vmatpush1.msra.mxu0 0.0
        %883 = vmatprep.subr.mxu0 0.0
        %884 = vmatpush1.msra.mxu0 0.0
        %885 = vmatprep.subr.mxu0 0.0
        %886 = vmatpush1.msra.mxu0 0.0
        %887 = vmatprep.subr.mxu0 0.0
        %888 = vmatpush1.msra.mxu0 0.0
        %889 = vmatprep.subr.mxu0 0.0
        %890 = vmatpush1.msra.mxu0 0.0
        %891 = vmatprep.subr.mxu0 0.0
        %892 = vmatpush1.msra.mxu0 0.0
        %893 = vmatprep.subr.mxu0 0.0
        %894 = vmatpush1.msra.mxu0 0.0
        %895 = vmatprep.subr.mxu0 0.0
        %896 = vmatpush1.msra.mxu0 0.0
        %897 = vmatprep.subr.mxu0 0.0
        %898 = vmatpush1.msra.mxu0 0.0
        %899 = vmatprep.subr.mxu0 0.0
        %900 = vmatpush1.msra.mxu0 0.0
        %901 = vmatprep.subr.mxu0 0.0
        %902 = vmatpush1.msra.mxu0 0.0
        %903 = vmatprep.subr.mxu0 0.0
        %904 = vmatpush1.msra.mxu0 0.0
        %905 = vmatprep.subr.mxu0 0.0
        %906 = vmatpush1.msra.mxu0 0.0
        %907 = vmatprep.subr.mxu0 0.0
        %908 = vmatpush1.msra.mxu0 0.0
        %909 = vmatprep.subr.mxu0 0.0
        %910 = vmatpush1.msra.mxu0 0.0
        %911 = vmatprep.mubr.f32.mxu0 0.0
        %912 = vmatmul.mubr.f32.gmra.mrb[0].mxu0 %v845
        %v913 = vpop.f32.mrb[0].mxu0
        %v914 = vadd.f32 0.0, %v913
        %v915 = vpop.f32.mrb[0].mxu0
        %916 = vdwg.mxu0
        %917 = vst.msk [vmem:[%s385] sm:$0xff] %vm581, %v838
        %v918 = vld [vmem:[%s349] sm:$0xff]
        %v919 = vld [vmem:[#allocation3] sm:$0x1]
        %921 = vset.pattern.permute.xlu0 0
        %922 = vperm.xlu0 %921, %v652
        %v923 = vpop.permute.xlu0 %922
        %v925 = vmul.f32 %v923, %v918
        %v926 = vsel %vm502, %v925, 0.0
        %v927 = vrot.slane %v926, 4
        %v928 = vadd.f32 %v926, %v927
        %v929 = vrot.slane %v928, 2
        %v930 = vadd.f32 %v928, %v929
        %v931 = vrot.slane %v930, 1
        %v932 = vadd.f32 %v930, %v931
        %v933 = vadd.f32 %v919, %v932
        %vm934 = vcmask 122880
        %935 = vst.msk [vmem:[#allocation3] sm:$0x1] %vm934, %v933
        %s936 = scalar_lea.vmem %s349, 8 [#allocation6]
        %v937 = vld [vmem:[%s936] sm:$0xff]
        %v938 = vld [vmem:[#allocation3] sm:$0x1]
        %940 = vset.pattern.permute.xlu0 0
        %941 = vperm.xlu0 %940, %v914
        %v942 = vpop.permute.xlu0 %941
        %v944 = vmul.f32 %v942, %v937
        %v945 = vsel %vm502, %v944, 0.0
        %v946 = vrot.slane %v945, 4
        %v947 = vadd.f32 %v945, %v946
        %v948 = vrot.slane %v947, 2
        %v949 = vadd.f32 %v947, %v948
        %v950 = vrot.slane %v949, 1
        %v951 = vadd.f32 %v949, %v950
        %v952 = vadd.f32 %v938, %v951
        %953 = vst.msk [vmem:[#allocation3] sm:$0x1] %vm934, %v952
        %p954 = scmp.eq.s32.totalorder %s29, 1
        // Predicated region
        $region95: #{tpu_custom_call.1} parent=81 // pred_check
          %p955 = pneg %p954
        $region96: #{tpu_custom_call.1} parent=81 // pred_check_branch
          %957 = sbr.rel (%p955) target = $region98
        $region97: #{tpu_custom_call.1} parent=81 // pred_region
          %v958 = vld [vmem:[#allocation3] sm:$0x1]
          %959 = vst.msk [vmem:[#allocation9] sm:$0x1] %vm934, %v958
        $region98: #{tpu_custom_call.1} parent=81 // pred_fallthru
          _
        %s960 = sand.u32 %s215, 1
        %s961 = scalar_lea.sflag [#allocation11], %s960
        %s962 = sand.u32 %s215, 1
        %s963 = smul.addr %s962, 8
        %s964 = scalar_lea.vmem [#allocation10], %s963
        // Predicated region
        $region99: #{tpu_custom_call.1} parent=81 // pred_check
          %p965 = pneg %p199
        $region100: #{tpu_custom_call.1} parent=81 // pred_check_branch
          %967 = sbr.rel (%p965) target = $region102
        $region101: #{tpu_custom_call.1} parent=81 // pred_region
          %s969 = ssub.s32 16, 16
          %970 = vsyncadd [#allocation8], %s969
          %s972 = sshll.u32 [#allocation9], 4
          %s973 = int_to_ptr.vmem [resolvable:$true] %s972
          %975 = dma.vmem_to_hbm [thread:$0]  %s973, 16, %s7, [#allocation8]
        $region102: #{tpu_custom_call.1} parent=81 // pred_fallthru
          _
        // Predicated region
        $region103: #{tpu_custom_call.1} parent=81 // pred_check
          %p976 = pneg %p225
        $region104: #{tpu_custom_call.1} parent=81 // pred_check_branch
          %978 = sbr.rel (%p976) target = $region106
        $region105: #{tpu_custom_call.1} parent=81 // pred_region
          %s980 = ssub.s32 128, 128
          %981 = vsyncadd %s961, %s980
          %s982 = smul.addr %s29, 128
          %s983 = scalar_lea.hbm %s8, %s982
          %s985 = sshll.u32 %s964, 4
          %s986 = int_to_ptr.vmem [resolvable:$true] %s985
          %988 = dma.vmem_to_hbm [thread:$0]  %s986, 128, %s983, %s961
        $region106: #{tpu_custom_call.1} parent=81 // pred_fallthru
          _
        // Predicated region
        $region107: #{tpu_custom_call.1} parent=81 // pred_check
          %p989 = pneg %p199
        $region108: #{tpu_custom_call.1} parent=81 // pred_check_branch
          %991 = sbr.rel (%p989) target = $region110
        $region109: #{tpu_custom_call.1} parent=81 // pred_region
          %992 = dma.done [#allocation8], 16
        $region110: #{tpu_custom_call.1} parent=81 // pred_fallthru
          _
      $region82: #{tpu_custom_call.1} parent=5 // pred_fallthru
        _
      %p993 = scmp.le.s32.totalorder 2, %s24
      // Predicated region
      $region111: #{tpu_custom_call.1} parent=5 // pred_check
        %p994 = pneg %p993
      $region112: #{tpu_custom_call.1} parent=5 // pred_check_branch
        %996 = sbr.rel (%p994) target = $region114
      $region113: #{tpu_custom_call.1} parent=5 // pred_region
        %s997 = ssub.s32 %s24, 2
        // Predicated region
        $region115: #{tpu_custom_call.1} parent=113 // pred_check
          %p998 = pneg %p231
        $region116: #{tpu_custom_call.1} parent=113 // pred_check_branch
          %1000 = sbr.rel (%p998) target = $region118
        $region117: #{tpu_custom_call.1} parent=113 // pred_region
          %s1001 = sand.u32 %s216, 1
          %s1002 = scalar_lea.sflag [#allocation11], %s1001
          %s1003 = sand.u32 %s216, 1
          %s1004 = smul.addr %s1003, 8
          %s1005 = scalar_lea.vmem [#allocation10], %s1004
          %1006 = dma.done %s1002, 128
        $region118: #{tpu_custom_call.1} parent=113 // pred_fallthru
          _
      $region114: #{tpu_custom_call.1} parent=5 // pred_fallthru
        _
    $region6: #{tpu_custom_call.1} parent=1 // loop_footer
      %s28 = sadd.s32 1, %s24
    $region7: #{tpu_custom_call.1} parent=1 // loop_footer_branch
      %23 = sbr.rel target = $region3
    $region8: #{tpu_custom_call.1} parent=1 // loop_exit
      _
    %1007 = vsyncpa [#allocation7], 1
    %s1008 = scalar_lea.sflag [#allocation7], 1
    %1009 = vsyncpa %s1008, 1
    %1010 = vsyncpa [#allocation8], 1
    %s1011 = scalar_lea.sflag [#allocation8], 1
    %1012 = vsyncpa %s1011, 1
    %1013 = vsyncpa [#allocation11], 1
    %s1014 = scalar_lea.sflag [#allocation11], 1
    %1015 = vsyncpa %s1014, 1

</llo_original>
